<compile_context>
chip_gen: v7x
topology: tpu7x:2x2x1
jax: 0.10.0
libtpu: 0.0.40
codegen_flags: <defaults>
</compile_context>

<pallas_src>
import jax
import jax.numpy as jnp
import numpy as np
from jax.experimental import pallas as pl
from jax.experimental.pallas import tpu as pltpu


def amortized_gauss_kernel(v_ref, w1_ref, b1_ref, wh_ref, bh_ref, out_ref):
    # Stage 1: hidden = tanh(v @ W1 + b1).
    # bf16 operands on the MXU, f32 accumulation; bias add + tanh in f32 (VPU/EUP).
    h = jnp.tanh(
        jnp.dot(v_ref[...], w1_ref[...], preferred_element_type=jnp.float32)
        + b1_ref[...]
    )
    # Stage 2: fused mean/log_std heads in one MXU pass; lane-dense (128-wide)
    # f32 store of the zero-padded (tile, n_pad) result.
    out_ref[...] = (
        jnp.dot(h.astype(wh_ref.dtype), wh_ref[...],
                preferred_element_type=jnp.float32)
        + bh_ref[...]
    )


def amortized_gauss_forward(v, w1, b1, wm, bm, ws, bs, *,
                            block_batch=1024, use_bf16=True):
    """Returns (mean, log_std) = param_net(v), computed in a Pallas kernel."""
    B, V = v.shape
    H = w1.shape[1]
    HD = wm.shape[1]

    # ---- fuse the two heads; pad output columns to a 128-lane multiple ----
    w_head = jnp.concatenate([wm, ws], axis=1)        # (H, 2*HD)
    b_head = jnp.concatenate([bm, bs], axis=1)        # (1, 2*HD)
    n_out = 2 * HD
    n_pad = pl.cdiv(n_out, 128) * 128
    if n_pad != n_out:
        w_head = jnp.pad(w_head, ((0, 0), (0, n_pad - n_out)))
        b_head = jnp.pad(b_head, ((0, 0), (0, n_pad - n_out)))

    # ---- bf16 MXU operands (accumulation stays f32 inside the kernel) ----
    mxu_dtype = jnp.bfloat16 if use_bf16 else jnp.float32
    v_in = v.astype(mxu_dtype)
    w1_in = w1.astype(mxu_dtype)
    wh_in = w_head.astype(mxu_dtype)
    b1_in = b1.astype(jnp.float32)
    bh_in = b_head.astype(jnp.float32)

    # ---- batch tiling: grid-less for small B, pad-and-slice otherwise ----
    tile = min(block_batch, B)
    B_pad = pl.cdiv(B, tile) * tile
    if B_pad != B:
        v_in = jnp.pad(v_in, ((0, B_pad - B), (0, 0)))
    grid = (B_pad // tile,)

    in_specs = [
        pl.BlockSpec((tile, V), lambda i: (i, 0)),    # v (batch-tiled)
        pl.BlockSpec((V, H), lambda i: (0, 0)),       # W1 (broadcast)
        pl.BlockSpec((1, H), lambda i: (0, 0)),       # b1
        pl.BlockSpec((H, n_pad), lambda i: (0, 0)),   # fused Wm||Ws (padded)
        pl.BlockSpec((1, n_pad), lambda i: (0, 0)),   # fused bm||bs (padded)
    ]
    out_specs = pl.BlockSpec((tile, n_pad), lambda i: (i, 0))

    out = pl.pallas_call(
        amortized_gauss_kernel,
        out_shape=jax.ShapeDtypeStruct((B_pad, n_pad), jnp.float32),
        grid=grid,
        in_specs=in_specs,
        out_specs=out_specs,
        compiler_params=pltpu.CompilerParams(
            dimension_semantics=("parallel",),   # v7x: shard batch across 2 TCs
        ),
    )(v_in, w1_in, b1_in, wh_in, bh_in)

    mean = out[:B, :HD]
    log_std = out[:B, HD:2 * HD]
    return mean, log_std


# ---- AmortizedGauss API (glue in plain JAX, forward hot path in Pallas) ----

def expect(v, params):
    """E[h|v] = mean."""
    return amortized_gauss_forward(v, *params)[0]


def implicit_net(v, params, eps):
    """Sample from q(h|v): mean + exp(log_std) * eps (elementwise glue)."""
    mean, log_std = amortized_gauss_forward(v, *params)
    return mean + jnp.exp(log_std) * eps


def log_q(h, v, params):
    """log q(h|v) = sum_d log N(h_d; mean_d, exp(log_std_d))  (glue)."""
    mean, log_std = amortized_gauss_forward(v, *params)
    z = (h - mean) * jnp.exp(-log_std)
    return jnp.sum(-0.5 * z * z - log_std - 0.5 * jnp.log(2.0 * jnp.pi), axis=-1)


if __name__ == "__main__":
    # Small shapes consistent with the module: v is batch x v_dim, latent h_dim.
    B, V, H, HD = 16, 64, 32, 16

    key = jax.random.PRNGKey(0)
    k_v, k_w1, k_b1, k_wm, k_bm, k_ws, k_bs, k_eps = jax.random.split(key, 8)

    v = jax.random.normal(k_v, (B, V), dtype=jnp.float32)

    # Deterministic parameter init (synthetic; no checkpoint loading).
    w1 = jax.random.normal(k_w1, (V, H), dtype=jnp.float32) * 0.1
    b1 = jax.random.normal(k_b1, (1, H), dtype=jnp.float32) * 0.1
    wm = jax.random.normal(k_wm, (H, HD), dtype=jnp.float32) * 0.1
    bm = jax.random.normal(k_bm, (1, HD), dtype=jnp.float32) * 0.1
    ws = jax.random.normal(k_ws, (H, HD), dtype=jnp.float32) * 0.1
    bs = jax.random.normal(k_bs, (1, HD), dtype=jnp.float32) * 0.1
    params = (w1, b1, wm, bm, ws, bs)

    mean, log_std = jax.block_until_ready(amortized_gauss_forward(v, *params))

    # Matched-precision reference: same bf16 MXU operands, f32 accumulation.
    v_b, w1_b = v.astype(jnp.bfloat16), w1.astype(jnp.bfloat16)
    wm_b, ws_b = wm.astype(jnp.bfloat16), ws.astype(jnp.bfloat16)
    h_m = jnp.tanh(jnp.dot(v_b, w1_b, preferred_element_type=jnp.float32) + b1)
    h_mb = h_m.astype(jnp.bfloat16)
    mean_m = jnp.dot(h_mb, wm_b, preferred_element_type=jnp.float32) + bm
    lstd_m = jnp.dot(h_mb, ws_b, preferred_element_type=jnp.float32) + bs
    np.testing.assert_allclose(np.asarray(mean), np.asarray(mean_m),
                               rtol=1e-2, atol=1e-2)
    np.testing.assert_allclose(np.asarray(log_std), np.asarray(lstd_m),
                               rtol=1e-2, atol=1e-2)

    # Loose check against the full-f32 reference (documents bf16 MXU error).
    h_f = jnp.tanh(v @ w1 + b1)
    np.testing.assert_allclose(np.asarray(mean), np.asarray(h_f @ wm + bm),
                               rtol=5e-2, atol=5e-2)
    np.testing.assert_allclose(np.asarray(log_std), np.asarray(h_f @ ws + bs),
                               rtol=5e-2, atol=5e-2)

    # Exercise the tiled + pad-and-slice batch path: B=300 with 128-row tiles
    # -> grid of 3, padded batch of 384, no divisibility assert needed.
    B2 = 300
    v2 = jax.random.normal(jax.random.PRNGKey(1), (B2, V), dtype=jnp.float32)
    mean2, log_std2 = jax.block_until_ready(
        amortized_gauss_forward(v2, *params, block_batch=128))
    assert mean2.shape == (B2, HD) and log_std2.shape == (B2, HD)
    h2 = jnp.tanh(v2 @ w1 + b1)
    np.testing.assert_allclose(np.asarray(mean2), np.asarray(h2 @ wm + bm),
                               rtol=5e-2, atol=5e-2)
    np.testing.assert_allclose(np.asarray(log_std2), np.asarray(h2 @ ws + bs),
                               rtol=5e-2, atol=5e-2)

    # Exercise the sampling / log-density glue over the kernel outputs.
    eps = jax.random.normal(k_eps, (B, HD), dtype=jnp.float32)
    h_sample = jax.block_until_ready(implicit_net(v, params, eps))
    assert h_sample.shape == (B, HD)
    lq = jax.block_until_ready(log_q(h_sample, v, params))
    assert lq.shape == (B,)
    e = jax.block_until_ready(expect(v, params))
    assert e.shape == (B, HD)

    print("KERNEL_OK")
</pallas_src>

<mosaic_0001>
module attributes {stable_mosaic.version = 11 : i64} {
  func.func @amortized_gauss_kernel(%arg0: i32, %arg1: memref<16x64xbf16, #tpu.memory_space<vmem>>, %arg2: memref<64x32xbf16, #tpu.memory_space<vmem>>, %arg3: memref<1x32xf32, #tpu.memory_space<vmem>>, %arg4: memref<32x128xbf16, #tpu.memory_space<vmem>>, %arg5: memref<1x128xf32, #tpu.memory_space<vmem>>, %arg6: memref<16x128xf32, #tpu.memory_space<vmem>>) attributes {dimension_semantics = [#tpu.dimension_semantics<parallel>], iteration_bounds = array<i64: 1>, scalar_prefetch = 0 : i64, scratch_operands = 0 : i64, tpu.core_type = #tpu.core_type<tc>, window_params = [{transform_indices = @transform_0, window_bounds = array<i64: 16, 64>}, {pipeline_mode = #tpu.pipeline_mode<synchronous>, transform_indices = @transform_1, window_bounds = array<i64: 64, 32>}, {pipeline_mode = #tpu.pipeline_mode<synchronous>, transform_indices = @transform_2, window_bounds = array<i64: 1, 32>}, {pipeline_mode = #tpu.pipeline_mode<synchronous>, transform_indices = @transform_3, window_bounds = array<i64: 32, 128>}, {pipeline_mode = #tpu.pipeline_mode<synchronous>, transform_indices = @transform_4, window_bounds = array<i64: 1, 128>}, {transform_indices = @transform_5, window_bounds = array<i64: 16, 128>}]} {
    %c0 = arith.constant 0 : index
    %c0_0 = arith.constant 0 : index
    %0 = vector.load %arg1[%c0, %c0_0] : memref<16x64xbf16, #tpu.memory_space<vmem>>, vector<16x64xbf16>
    %c0_1 = arith.constant 0 : index
    %c0_2 = arith.constant 0 : index
    %1 = vector.load %arg2[%c0_1, %c0_2] : memref<64x32xbf16, #tpu.memory_space<vmem>>, vector<64x32xbf16>
    %cst = arith.constant dense<0.000000e+00> : vector<16x32xf32>
    %2 = tpu.matmul %0, %1, %cst {dimension_numbers = #tpu.dot_dimension_numbers<[1], [0], [0], [1], [0, 0, 1, 1], [], []>} : vector<16x64xbf16>, vector<64x32xbf16>, vector<16x32xf32> -> vector<16x32xf32>
    %c0_3 = arith.constant 0 : index
    %c0_4 = arith.constant 0 : index
    %3 = vector.load %arg3[%c0_3, %c0_4] : memref<1x32xf32, #tpu.memory_space<vmem>>, vector<1x32xf32>
    %4 = vector.broadcast %3 : vector<1x32xf32> to vector<16x32xf32>
    %5 = arith.addf %2, %4 : vector<16x32xf32>
    %6 = math.tanh %5 : vector<16x32xf32>
    %7 = arith.truncf %6 : vector<16x32xf32> to vector<16x32xbf16>
    %c0_5 = arith.constant 0 : index
    %c0_6 = arith.constant 0 : index
    %8 = vector.load %arg4[%c0_5, %c0_6] : memref<32x128xbf16, #tpu.memory_space<vmem>>, vector<32x128xbf16>
    %cst_7 = arith.constant dense<0.000000e+00> : vector<16x128xf32>
    %9 = tpu.matmul %7, %8, %cst_7 {dimension_numbers = #tpu.dot_dimension_numbers<[1], [0], [0], [1], [0, 0, 1, 1], [], []>} : vector<16x32xbf16>, vector<32x128xbf16>, vector<16x128xf32> -> vector<16x128xf32>
    %c0_8 = arith.constant 0 : index
    %c0_9 = arith.constant 0 : index
    %10 = vector.load %arg5[%c0_8, %c0_9] : memref<1x128xf32, #tpu.memory_space<vmem>>, vector<1x128xf32>
    %11 = vector.broadcast %10 : vector<1x128xf32> to vector<16x128xf32>
    %12 = arith.addf %9, %11 : vector<16x128xf32>
    %c0_10 = arith.constant 0 : index
    %c0_11 = arith.constant 0 : index
    %13 = vector.load %arg6[%c0_10, %c0_11] : memref<16x128xf32, #tpu.memory_space<vmem>>, vector<16x128xf32>
    tpu.vector_store %arg6[%c0_10, %c0_11], %12 {strides = array<i32>} : memref<16x128xf32, #tpu.memory_space<vmem>>, vector<16x128xf32>,
    return
  }
  func.func @transform_0(%arg0: i32) -> (i32, i32) {
    %c0_i32 = arith.constant 0 : i32
    %c0_i32_0 = arith.constant 0 : i32
    return %arg0, %c0_i32 : i32, i32
  }
  func.func @transform_1(%arg0: i32) -> (i32, i32) {
    %c0_i32 = arith.constant 0 : i32
    %c0_i32_0 = arith.constant 0 : i32
    %c0_i32_1 = arith.constant 0 : i32
    return %c0_i32, %c0_i32_0 : i32, i32
  }
  func.func @transform_2(%arg0: i32) -> (i32, i32) {
    %c0_i32 = arith.constant 0 : i32
    %c0_i32_0 = arith.constant 0 : i32
    %c0_i32_1 = arith.constant 0 : i32
    return %c0_i32, %c0_i32_0 : i32, i32
  }
  func.func @transform_3(%arg0: i32) -> (i32, i32) {
    %c0_i32 = arith.constant 0 : i32
    %c0_i32_0 = arith.constant 0 : i32
    %c0_i32_1 = arith.constant 0 : i32
    return %c0_i32, %c0_i32_0 : i32, i32
  }
  func.func @transform_4(%arg0: i32) -> (i32, i32) {
    %c0_i32 = arith.constant 0 : i32
    %c0_i32_0 = arith.constant 0 : i32
    %c0_i32_1 = arith.constant 0 : i32
    return %c0_i32, %c0_i32_0 : i32, i32
  }
  func.func @transform_5(%arg0: i32) -> (i32, i32) {
    %c0_i32 = arith.constant 0 : i32
    %c0_i32_0 = arith.constant 0 : i32
    return %arg0, %c0_i32 : i32, i32
  }
}

</mosaic_0001>

<llo_original>
// kernel: tpu_custom_call.1
$region0: #{tpu_custom_call.1}
  #allocation0 [shape = 'u32[]', space=smem, size = 0x4, offset = 0x4, fixed_abs, tag = 'smem constant byte address 0x4 - core index']
  #allocation1 [shape = 'u32[144,128]{1,0:T(1,128)}', space=vmem, size = 0x12000, scoped, tag = 'internal scratch']
  %s0 = inlined_call_operand.vmem [shape: bf16[16,64], index: 0, kind: input, shape index: {}]
  %s1 = inlined_call_operand.vmem [shape: bf16[64,32], index: 1, kind: input, shape index: {}]
  %s2 = inlined_call_operand.vmem [shape: f32[1,32], index: 2, kind: input, shape index: {}]
  %s3 = inlined_call_operand.vmem [shape: bf16[32,128], index: 3, kind: input, shape index: {}]
  %s4 = inlined_call_operand.vmem [shape: f32[1,128], index: 4, kind: input, shape index: {}]
  %s5 = inlined_call_operand.hbm [shape: f32[16,128], index: 5, kind: output, shape index: {}]
  %s6 = sld [smem:[#allocation0]]
  $region30: #{tpu_custom_call.1} parent=0
    _
  %s8 = ssub.s32 1, %s6
  %s9 = scalar_select 0, %s8, %s6
  $region1: #{tpu_custom_call.1} parent=0
    #allocation2 [shape = 'u8[8192]{0}', space=vmem, size = 0x2000, scoped, tag = 'output window, operand 0, single buffered']
    #allocation3 [shape = 's32[1]{0}', space=sflag, size = 0x4, scoped, tag = 'scoped memory for tpu_custom_call.1']
    %10 = vsyncpa [#allocation3], 0
    // Predicated region
    $region2: #{tpu_custom_call.1} parent=1 // pred_check
      _
    $region3: #{tpu_custom_call.1} parent=1 // pred_check_branch
      %12 = sbr.rel (0) target = $region5
    $region4: #{tpu_custom_call.1} parent=1 // pred_region
      _
    $region5: #{tpu_custom_call.1} parent=1 // pred_fallthru
      _
    // Predicated region
    $region6: #{tpu_custom_call.1} parent=1 // pred_check
      _
    $region7: #{tpu_custom_call.1} parent=1 // pred_check_branch
      %14 = sbr.rel (0) target = $region9
    $region8: #{tpu_custom_call.1} parent=1 // pred_region
      _
    $region9: #{tpu_custom_call.1} parent=1 // pred_fallthru
      _
    // Predicated region
    $region10: #{tpu_custom_call.1} parent=1 // pred_check
      _
    $region11: #{tpu_custom_call.1} parent=1 // pred_check_branch
      %16 = sbr.rel (0) target = $region13
    $region12: #{tpu_custom_call.1} parent=1 // pred_region
      _
    $region13: #{tpu_custom_call.1} parent=1 // pred_fallthru
      _
    // Predicated region
    $region14: #{tpu_custom_call.1} parent=1 // pred_check
      _
    $region15: #{tpu_custom_call.1} parent=1 // pred_check_branch
      %18 = sbr.rel (0) target = $region17
    $region16: #{tpu_custom_call.1} parent=1 // pred_region
      _
    $region17: #{tpu_custom_call.1} parent=1 // pred_fallthru
      _
    // Predicated region
    $region18: #{tpu_custom_call.1} parent=1 // pred_check
      _
    $region19: #{tpu_custom_call.1} parent=1 // pred_check_branch
      %20 = sbr.rel (0) target = $region21
    $region20: #{tpu_custom_call.1} parent=1 // pred_region
      _
    $region21: #{tpu_custom_call.1} parent=1 // pred_fallthru
      _
    %v22 = vld [vmem:[%s0] sm:$0xf]
    %v23 = vld [vmem:[%s0 + $0x4] sm:$0xf]
    %v24 = vld [vmem:[%s1] sm:$0xf]
    %v25 = vld [vmem:[%s1 + $0x4] sm:$0xf]
    %v26 = vld [vmem:[%s1 + $0x8] sm:$0xf]
    %v27 = vld [vmem:[%s1 + $0xc] sm:$0xf]
    %v28 = vld [vmem:[%s1 + $0x10] sm:$0xf]
    %v29 = vld [vmem:[%s1 + $0x14] sm:$0xf]
    %v30 = vld [vmem:[%s1 + $0x18] sm:$0xf]
    %v31 = vld [vmem:[%s1 + $0x1c] sm:$0xf]
    %v32 = vld [vmem:[%s2] sm:$0x1]
    %v34 = vlaneseq
    %v35 = vshrl.u32 %v34, 7
    %v36 = vsub.s32 0, %v35
    %v37 = vrot.slane %v32, %v36
    %v41 = vunpack.c.l.b16 %v22
    %v42 = vunpack.c.l.b16 %v23
    %v43 = vpack.c.b16 %v42, %v41
    %v52 = vunpack.c.l.b16 %v24
    %v53 = vunpack.c.l.b16 %v25
    %v54 = vunpack.c.l.b16 %v26
    %v55 = vunpack.c.l.b16 %v27
    %v56 = vunpack.c.l.b16 %v28
    %v57 = vunpack.c.l.b16 %v29
    %v58 = vunpack.c.l.b16 %v30
    %v59 = vunpack.c.l.b16 %v31
    %v60 = vpack.c.b16 %v53, %v52
    %v61 = vpack.c.b16 %v55, %v54
    %v62 = vpack.c.b16 %v57, %v56
    %v63 = vpack.c.b16 %v59, %v58
    %vm68 = vcmask 523264
    %v70 = vsel %vm68, %v43, 0
    %72 = vmatprep.subr.bf16.mxu0 0
    %73 = vmatpush1.bf16.msra.mxu0 %v60
    %74 = vmatprep.subr.bf16.mxu0 0
    %75 = vmatpush1.bf16.msra.mxu0 %v61
    %76 = vmatprep.subr.bf16.mxu0 0
    %77 = vmatpush1.bf16.msra.mxu0 %v62
    %78 = vmatprep.subr.bf16.mxu0 0
    %79 = vmatpush1.bf16.msra.mxu0 %v63
    %80 = vmatprep.subr.bf16.mxu0 0
    %81 = vmatpush1.bf16.msra.mxu0 0
    %82 = vmatprep.subr.bf16.mxu0 0
    %83 = vmatpush1.bf16.msra.mxu0 0
    %84 = vmatprep.subr.bf16.mxu0 0
    %85 = vmatpush1.bf16.msra.mxu0 0
    %86 = vmatprep.subr.bf16.mxu0 0
    %87 = vmatpush1.bf16.msra.mxu0 0
    %88 = vmatprep.subr.bf16.mxu0 0
    %89 = vmatpush1.bf16.msra.mxu0 0
    %90 = vmatprep.subr.bf16.mxu0 0
    %91 = vmatpush1.bf16.msra.mxu0 0
    %92 = vmatprep.subr.bf16.mxu0 0
    %93 = vmatpush1.bf16.msra.mxu0 0
    %94 = vmatprep.subr.bf16.mxu0 0
    %95 = vmatpush1.bf16.msra.mxu0 0
    %96 = vmatprep.subr.bf16.mxu0 0
    %97 = vmatpush1.bf16.msra.mxu0 0
    %98 = vmatprep.subr.bf16.mxu0 0
    %99 = vmatpush1.bf16.msra.mxu0 0
    %100 = vmatprep.subr.bf16.mxu0 0
    %101 = vmatpush1.bf16.msra.mxu0 0
    %102 = vmatprep.subr.bf16.mxu0 0
    %103 = vmatpush1.bf16.msra.mxu0 0
    %104 = vmatprep.mubr.bf16.mxu0 0
    %105 = vmatmul.mubr.bf16.gmra.mrb[0].mxu0 %v70
    %v106 = vpop.f32.mrb[0].mxu0
    %v107 = vadd.f32 %v37, %v106
    %v108 = vpop.f32.mrb[0].mxu0
    %v109 = vpop.f32.mrb[0].mxu0
    %v110 = vadd.f32 %v37, %v109
    %v111 = vpop.f32.mrb[0].mxu0
    %112 = vdwg.mxu0
    %v113 = vtanh.pop %v107
    %v114 = vtanh.pop %v110
    %v115 = vpack.c.bf16 %v114, %v113
    %v116 = vld [vmem:[%s3] sm:$0xf]
    %v117 = vld [vmem:[%s3 + $0x4] sm:$0xf]
    %v118 = vld [vmem:[%s3 + $0x8] sm:$0xf]
    %v119 = vld [vmem:[%s3 + $0xc] sm:$0xf]
    %v120 = vld [vmem:[%s4] sm:$0x1]
    %v122 = vlaneseq
    %v123 = vshrl.u32 %v122, 7
    %v124 = vsub.s32 0, %v123
    %v125 = vrot.slane %v120, %v124
    %v131 = vunpack.c.l.b16 %v116
    %v132 = vunpack.c.l.b16 %v117
    %v133 = vunpack.c.l.b16 %v118
    %v134 = vunpack.c.l.b16 %v119
    %v135 = vpack.c.b16 %v132, %v131
    %v136 = vpack.c.b16 %v134, %v133
    %vm139 = vcmask 261120
    %v141 = vsel %vm139, %v115, 0
    %143 = vmatprep.subr.bf16.mxu0 0
    %144 = vmatpush1.bf16.msra.mxu0 %v135
    %145 = vmatprep.subr.bf16.mxu0 0
    %146 = vmatpush1.bf16.msra.mxu0 %v136
    %147 = vmatprep.subr.bf16.mxu0 0
    %148 = vmatpush1.bf16.msra.mxu0 0
    %149 = vmatprep.subr.bf16.mxu0 0
    %150 = vmatpush1.bf16.msra.mxu0 0
    %151 = vmatprep.subr.bf16.mxu0 0
    %152 = vmatpush1.bf16.msra.mxu0 0
    %153 = vmatprep.subr.bf16.mxu0 0
    %154 = vmatpush1.bf16.msra.mxu0 0
    %155 = vmatprep.subr.bf16.mxu0 0
    %156 = vmatpush1.bf16.msra.mxu0 0
    %157 = vmatprep.subr.bf16.mxu0 0
    %158 = vmatpush1.bf16.msra.mxu0 0
    %159 = vmatprep.subr.bf16.mxu0 0
    %160 = vmatpush1.bf16.msra.mxu0 0
    %161 = vmatprep.subr.bf16.mxu0 0
    %162 = vmatpush1.bf16.msra.mxu0 0
    %163 = vmatprep.subr.bf16.mxu0 0
    %164 = vmatpush1.bf16.msra.mxu0 0
    %165 = vmatprep.subr.bf16.mxu0 0
    %166 = vmatpush1.bf16.msra.mxu0 0
    %167 = vmatprep.subr.bf16.mxu0 0
    %168 = vmatpush1.bf16.msra.mxu0 0
    %169 = vmatprep.subr.bf16.mxu0 0
    %170 = vmatpush1.bf16.msra.mxu0 0
    %171 = vmatprep.subr.bf16.mxu0 0
    %172 = vmatpush1.bf16.msra.mxu0 0
    %173 = vmatprep.subr.bf16.mxu0 0
    %174 = vmatpush1.bf16.msra.mxu0 0
    %175 = vmatprep.mubr.bf16.mxu0 0
    %176 = vmatmul.mubr.bf16.gmra.mrb[0].mxu0 %v141
    %v177 = vpop.f32.mrb[0].mxu0
    %v178 = vadd.f32 %v125, %v177
    %v179 = vpop.f32.mrb[0].mxu0
    %v180 = vpop.f32.mrb[0].mxu0
    %v181 = vadd.f32 %v125, %v180
    %v182 = vpop.f32.mrb[0].mxu0
    %183 = vdwg.mxu0
    %184 = vst [vmem:[#allocation2] sm:$0xff] %v178
    %185 = vst [vmem:[#allocation2 + $0x8] sm:$0xff] %v181
    // Predicated region
    $region22: #{tpu_custom_call.1} parent=1 // pred_check
      _
    $region23: #{tpu_custom_call.1} parent=1 // pred_check_branch
      %187 = sbr.rel (0) target = $region25
    $region24: #{tpu_custom_call.1} parent=1 // pred_region
      %s189 = ssub.s32 256, 256
      %190 = vsyncadd [#allocation3], %s189
      %s191 = sshll.u32 [#allocation2], 4
      %s192 = int_to_ptr.vmem [resolvable:$true] %s191
      %197 = dma.vmem_to_hbm [thread:$0]  %s192, 256, %s5, [#allocation3], 128, 128, 8
    $region25: #{tpu_custom_call.1} parent=1 // pred_fallthru
      _
    // Predicated region
    $region26: #{tpu_custom_call.1} parent=1 // pred_check
      _
    $region27: #{tpu_custom_call.1} parent=1 // pred_check_branch
      %199 = sbr.rel (0) target = $region29
    $region28: #{tpu_custom_call.1} parent=1 // pred_region
      %200 = dma.done [#allocation3], 256
    $region29: #{tpu_custom_call.1} parent=1 // pred_fallthru
      _
    %201 = vsyncpa [#allocation3], 1

</llo_original>
